<compile_context>
chip_gen: v6e
topology: v6e:2x2x1
jax: 0.10.0
libtpu: 0.0.40
codegen_flags: <defaults>
</compile_context>

<pallas_src>
import functools

import jax
import jax.numpy as jnp
from jax.experimental import pallas as pl
from jax.experimental.pallas import tpu as pltpu

EPS = 1e-5  # torch.nn.LayerNorm default


def _round_up(x, m):
    return ((x + m - 1) // m) * m


def _prenorm_kernel(x_ref, gamma_ref, beta_ref, w_ref, bias_ref, o_ref):
    # x_ref: (TILE_ROWS, D) block of tokens.
    x = x_ref[...].astype(jnp.float32)

    # --- LayerNorm over the last axis (f32 accumulation, torch semantics) ---
    mean = jnp.mean(x, axis=-1, keepdims=True)
    centered = x - mean
    var = jnp.mean(centered * centered, axis=-1, keepdims=True)
    inv_std = jax.lax.rsqrt(var + EPS)
    # gamma/beta arrive pre-cast to f32 (1, D); broadcast over rows.
    y = centered * inv_std * gamma_ref[...] + beta_ref[...]

    # --- fn = Linear(dim, dim), fused. bf16 MXU inputs, f32 accumulation. ---
    out = jnp.dot(y.astype(jnp.bfloat16), w_ref[...],
                  preferred_element_type=jnp.float32)
    out = out + bias_ref[...]  # bias pre-cast to f32 (1, D)

    o_ref[...] = out.astype(o_ref.dtype)


def prenorm_linear(x, gamma, beta, w, b, *, tile_rows=None):
    """PreNorm(dim, fn=Linear(dim, dim)) forward.

    x: (B, N, D); gamma, beta: (D,); w: (D, D) [in_dim, out_dim]; b: (D,)
    """
    B, N, D = x.shape
    rows = B * N

    if tile_rows is None:
        # Big enough to amortize per-step overhead / feed the MXU, but never
        # bigger than the (sublane-rounded) problem.
        tile_rows = min(256, _round_up(rows, 8))
    tile_rows = _round_up(tile_rows, 8)

    padded_rows = _round_up(rows, tile_rows)

    x2d = x.reshape(rows, D)
    if padded_rows != rows:
        # Tail handling: pad with zeros; padded rows produce finite garbage
        # (beta @ w + bias) and are sliced off below.
        x2d = jnp.pad(x2d, ((0, padded_rows - rows), (0, 0)))

    # Pre-cast parameters ONCE outside the kernel (no per-iteration VPU casts).
    gamma2d = gamma.reshape(1, D).astype(jnp.float32)
    beta2d = beta.reshape(1, D).astype(jnp.float32)
    bias2d = b.reshape(1, D).astype(jnp.float32)
    w_bf16 = w.astype(jnp.bfloat16)

    grid = (padded_rows // tile_rows,)

    out_itemsize = jnp.dtype(x.dtype).itemsize

    # Rough VMEM footprint: double-buffered x tile + out tile (+ f32 temps) and
    # the (double-buffered by default) bf16 weight + small params.
    vmem_est = (2 * tile_rows * D * (x.dtype.itemsize + out_itemsize + 4)
                + 2 * D * D * 2 + 4 * D * 4)
    compiler_kwargs = dict(dimension_semantics=("parallel",))
    if vmem_est > 24 * 1024 * 1024:
        # Only needed for large tiles/weights; cap with headroom (v7x has 64 MiB).
        compiler_kwargs["vmem_limit_bytes"] = min(int(vmem_est * 1.5),
                                                  100 * 1024 * 1024)

    cost = pl.CostEstimate(
        flops=2 * padded_rows * D * D,
        transcendentals=0,
        bytes_accessed=(padded_rows * D * (x.dtype.itemsize + out_itemsize)
                        + D * D * 2 + 3 * D * 4),
    )

    out2d = pl.pallas_call(
        _prenorm_kernel,
        out_shape=jax.ShapeDtypeStruct((padded_rows, D), x.dtype),
        grid_spec=pltpu.PrefetchScalarGridSpec(
            num_scalar_prefetch=0,
            grid=grid,
            in_specs=[
                pl.BlockSpec((tile_rows, D), lambda i: (i, 0)),  # x rows
                pl.BlockSpec((1, D), lambda i: (0, 0)),          # gamma (f32)
                pl.BlockSpec((1, D), lambda i: (0, 0)),          # beta  (f32)
                pl.BlockSpec((D, D), lambda i: (0, 0)),          # weight (bf16, resident)
                pl.BlockSpec((1, D), lambda i: (0, 0)),          # bias  (f32)
            ],
            out_specs=pl.BlockSpec((tile_rows, D), lambda i: (i, 0)),
        ),
        compiler_params=pltpu.CompilerParams(**compiler_kwargs),
        cost_estimate=cost,
    )(x2d, gamma2d, beta2d, w_bf16, bias2d)

    return out2d[:rows].reshape(B, N, D)


def _reference(x, gamma, beta, w, b):
    # Mirrors the kernel's numerics: f32 LayerNorm, bf16 matmul inputs,
    # f32 accumulation.
    xf = x.astype(jnp.float32)
    mean = jnp.mean(xf, axis=-1, keepdims=True)
    var = jnp.mean((xf - mean) ** 2, axis=-1, keepdims=True)
    y = (xf - mean) * jax.lax.rsqrt(var + EPS) * gamma + beta
    out = jnp.dot(y.astype(jnp.bfloat16), w.astype(jnp.bfloat16),
                  preferred_element_type=jnp.float32) + b
    return out.astype(x.dtype)


if __name__ == "__main__":
    B, N, D = 2, 8, 32  # batch, tokens, embed dim

    key = jax.random.PRNGKey(0)
    kx, kw, kb = jax.random.split(key, 3)

    x = jax.random.normal(kx, (B, N, D), dtype=jnp.float32)

    # LayerNorm params: PyTorch default init (weight=1, bias=0)
    gamma = jnp.ones((D,), dtype=jnp.float32)
    beta = jnp.zeros((D,), dtype=jnp.float32)

    # fn = Linear(D, D): deterministic synthetic init
    w = jax.random.normal(kw, (D, D), dtype=jnp.float32) * (1.0 / jnp.sqrt(D))
    b = jax.random.normal(kb, (D,), dtype=jnp.float32) * 0.01

    out = prenorm_linear(x, gamma, beta, w, b)
    out = jax.block_until_ready(out)

    ref = _reference(x, gamma, beta, w, b)
    assert out.shape == (B, N, D)
    assert jnp.allclose(out, ref, atol=1e-2, rtol=1e-2), "mismatch vs reference"

    print("KERNEL_OK")
</pallas_src>

<mosaic_0001>
module attributes {stable_mosaic.version = 11 : i64} {
  func.func @_prenorm_kernel(%arg0: i32, %arg1: memref<16x32xf32, #tpu.memory_space<vmem>>, %arg2: memref<1x32xf32, #tpu.memory_space<vmem>>, %arg3: memref<1x32xf32, #tpu.memory_space<vmem>>, %arg4: memref<32x32xbf16, #tpu.memory_space<vmem>>, %arg5: memref<1x32xf32, #tpu.memory_space<vmem>>, %arg6: memref<16x32xf32, #tpu.memory_space<vmem>>) attributes {dimension_semantics = [#tpu.dimension_semantics<parallel>], iteration_bounds = array<i64: 1>, scalar_prefetch = 0 : i64, scratch_operands = 0 : i64, tpu.core_type = #tpu.core_type<tc>, window_params = [{transform_indices = @transform_0, window_bounds = array<i64: 16, 32>}, {pipeline_mode = #tpu.pipeline_mode<synchronous>, transform_indices = @transform_1, window_bounds = array<i64: 1, 32>}, {pipeline_mode = #tpu.pipeline_mode<synchronous>, transform_indices = @transform_2, window_bounds = array<i64: 1, 32>}, {pipeline_mode = #tpu.pipeline_mode<synchronous>, transform_indices = @transform_3, window_bounds = array<i64: 32, 32>}, {pipeline_mode = #tpu.pipeline_mode<synchronous>, transform_indices = @transform_4, window_bounds = array<i64: 1, 32>}, {transform_indices = @transform_5, window_bounds = array<i64: 16, 32>}]} {
    %c0 = arith.constant 0 : index
    %c0_0 = arith.constant 0 : index
    %0 = vector.load %arg1[%c0, %c0_0] : memref<16x32xf32, #tpu.memory_space<vmem>>, vector<16x32xf32>
    %cst = arith.constant dense<0.000000e+00> : vector<16xf32>
    %1 = vector.multi_reduction <add>, %0, %cst [1] : vector<16x32xf32> to vector<16xf32>
    %2 = vector.shape_cast %1 : vector<16xf32> to vector<16x1xf32>
    %cst_1 = arith.constant 3.200000e+01 : f32
    %3 = vector.broadcast %cst_1 : f32 to vector<16x1xf32>
    %4 = arith.divf %2, %3 : vector<16x1xf32>
    %5 = vector.broadcast %4 : vector<16x1xf32> to vector<16x32xf32>
    %6 = arith.subf %0, %5 : vector<16x32xf32>
    %7 = arith.mulf %6, %6 : vector<16x32xf32>
    %cst_2 = arith.constant dense<0.000000e+00> : vector<16xf32>
    %8 = vector.multi_reduction <add>, %7, %cst_2 [1] : vector<16x32xf32> to vector<16xf32>
    %9 = vector.shape_cast %8 : vector<16xf32> to vector<16x1xf32>
    %cst_3 = arith.constant 3.200000e+01 : f32
    %10 = vector.broadcast %cst_3 : f32 to vector<16x1xf32>
    %11 = arith.divf %9, %10 : vector<16x1xf32>
    %cst_4 = arith.constant 9.99999974E-6 : f32
    %12 = vector.broadcast %cst_4 : f32 to vector<16x1xf32>
    %13 = arith.addf %11, %12 : vector<16x1xf32>
    %14 = math.rsqrt %13 : vector<16x1xf32>
    %15 = vector.broadcast %14 : vector<16x1xf32> to vector<16x32xf32>
    %16 = arith.mulf %6, %15 : vector<16x32xf32>
    %c0_5 = arith.constant 0 : index
    %c0_6 = arith.constant 0 : index
    %17 = vector.load %arg2[%c0_5, %c0_6] : memref<1x32xf32, #tpu.memory_space<vmem>>, vector<1x32xf32>
    %18 = vector.broadcast %17 : vector<1x32xf32> to vector<16x32xf32>
    %19 = arith.mulf %16, %18 : vector<16x32xf32>
    %c0_7 = arith.constant 0 : index
    %c0_8 = arith.constant 0 : index
    %20 = vector.load %arg3[%c0_7, %c0_8] : memref<1x32xf32, #tpu.memory_space<vmem>>, vector<1x32xf32>
    %21 = vector.broadcast %20 : vector<1x32xf32> to vector<16x32xf32>
    %22 = arith.addf %19, %21 : vector<16x32xf32>
    %23 = arith.truncf %22 : vector<16x32xf32> to vector<16x32xbf16>
    %c0_9 = arith.constant 0 : index
    %c0_10 = arith.constant 0 : index
    %24 = vector.load %arg4[%c0_9, %c0_10] : memref<32x32xbf16, #tpu.memory_space<vmem>>, vector<32x32xbf16>
    %cst_11 = arith.constant dense<0.000000e+00> : vector<16x32xf32>
    %25 = tpu.matmul %23, %24, %cst_11 {dimension_numbers = #tpu.dot_dimension_numbers<[1], [0], [0], [1], [0, 0, 1, 1], [], []>} : vector<16x32xbf16>, vector<32x32xbf16>, vector<16x32xf32> -> vector<16x32xf32>
    %c0_12 = arith.constant 0 : index
    %c0_13 = arith.constant 0 : index
    %26 = vector.load %arg5[%c0_12, %c0_13] : memref<1x32xf32, #tpu.memory_space<vmem>>, vector<1x32xf32>
    %27 = vector.broadcast %26 : vector<1x32xf32> to vector<16x32xf32>
    %28 = arith.addf %25, %27 : vector<16x32xf32>
    %c0_14 = arith.constant 0 : index
    %c0_15 = arith.constant 0 : index
    %29 = vector.load %arg6[%c0_14, %c0_15] : memref<16x32xf32, #tpu.memory_space<vmem>>, vector<16x32xf32>
    tpu.vector_store %arg6[%c0_14, %c0_15], %28 {strides = array<i32>} : memref<16x32xf32, #tpu.memory_space<vmem>>, vector<16x32xf32>,
    return
  }
  func.func @transform_0(%arg0: i32) -> (i32, i32) {
    %c0_i32 = arith.constant 0 : i32
    %c0_i32_0 = arith.constant 0 : i32
    return %arg0, %c0_i32 : i32, i32
  }
  func.func @transform_1(%arg0: i32) -> (i32, i32) {
    %c0_i32 = arith.constant 0 : i32
    %c0_i32_0 = arith.constant 0 : i32
    %c0_i32_1 = arith.constant 0 : i32
    return %c0_i32, %c0_i32_0 : i32, i32
  }
  func.func @transform_2(%arg0: i32) -> (i32, i32) {
    %c0_i32 = arith.constant 0 : i32
    %c0_i32_0 = arith.constant 0 : i32
    %c0_i32_1 = arith.constant 0 : i32
    return %c0_i32, %c0_i32_0 : i32, i32
  }
  func.func @transform_3(%arg0: i32) -> (i32, i32) {
    %c0_i32 = arith.constant 0 : i32
    %c0_i32_0 = arith.constant 0 : i32
    %c0_i32_1 = arith.constant 0 : i32
    return %c0_i32, %c0_i32_0 : i32, i32
  }
  func.func @transform_4(%arg0: i32) -> (i32, i32) {
    %c0_i32 = arith.constant 0 : i32
    %c0_i32_0 = arith.constant 0 : i32
    %c0_i32_1 = arith.constant 0 : i32
    return %c0_i32, %c0_i32_0 : i32, i32
  }
  func.func @transform_5(%arg0: i32) -> (i32, i32) {
    %c0_i32 = arith.constant 0 : i32
    %c0_i32_0 = arith.constant 0 : i32
    return %arg0, %c0_i32 : i32, i32
  }
}

</mosaic_0001>

<llo_original>
// kernel: tpu_custom_call.1
$region0: #{tpu_custom_call.1}
  #allocation0 [shape = 'u32[]', space=smem, size = 0x4, offset = 0x4, fixed_abs, tag = 'smem constant byte address 0x4 - core index']
  #allocation1 [shape = 'u32[144,128]{1,0:T(1,128)}', space=vmem, size = 0x12000, scoped, tag = 'internal scratch']
  %s0 = inlined_call_operand.hbm [shape: f32[16,32], index: 0, kind: input, shape index: {}]
  %s1 = inlined_call_operand.vmem [shape: f32[1,32], index: 1, kind: input, shape index: {}]
  %s2 = inlined_call_operand.vmem [shape: f32[1,32], index: 2, kind: input, shape index: {}]
  %s3 = inlined_call_operand.hbm [shape: bf16[32,32], index: 3, kind: input, shape index: {}]
  %s4 = inlined_call_operand.vmem [shape: f32[1,32], index: 4, kind: input, shape index: {}]
  %s5 = inlined_call_operand.hbm [shape: f32[16,32], index: 5, kind: output, shape index: {}]
  %s6 = sld [smem:[#allocation0]]
  $region38: #{tpu_custom_call.1} parent=0
    _
  %s8 = ssub.s32 1, %s6
  %s9 = scalar_select 0, %s8, %s6
  $region1: #{tpu_custom_call.1} parent=0
    #allocation2 [shape = 'u8[8192]{0}', space=vmem, size = 0x2000, scoped, tag = 'input window, operand 0, single buffered']
    #allocation3 [shape = 's32[1]{0}', space=sflag, size = 0x4, scoped, tag = 'scoped memory for tpu_custom_call.1']
    #allocation4 [shape = 's32[1]{0}', space=sflag, size = 0x4, scoped, tag = 'scoped memory for tpu_custom_call.1']
    #allocation5 [shape = 'u8[8192]{0}', space=vmem, size = 0x2000, scoped, tag = 'input window, operand 3, single buffered']
    #allocation6 [shape = 's32[1]{0}', space=sflag, size = 0x4, scoped, tag = 'scoped memory for tpu_custom_call.1']
    #allocation7 [shape = 'u8[8192]{0}', space=vmem, size = 0x2000, scoped, tag = 'output window, operand 0, single buffered']
    %10 = vsyncpa [#allocation3], 0
    %11 = vsyncpa [#allocation6], 0
    %12 = vsyncpa [#allocation4], 0
    // Predicated region
    $region2: #{tpu_custom_call.1} parent=1 // pred_check
      _
    $region3: #{tpu_custom_call.1} parent=1 // pred_check_branch
      %14 = sbr.rel (0) target = $region5
    $region4: #{tpu_custom_call.1} parent=1 // pred_region
      %s16 = ssub.s32 256, 256
      %17 = vsyncadd [#allocation3], %s16
      %s18 = sshll.u32 [#allocation2], 4
      %s19 = int_to_ptr.vmem [resolvable:$true] %s18
      %24 = dma.hbm_to_vmem [thread:$0]  %s0, 256, %s19, [#allocation3], 128, 128, 8
    $region5: #{tpu_custom_call.1} parent=1 // pred_fallthru
      _
    // Predicated region
    $region6: #{tpu_custom_call.1} parent=1 // pred_check
      _
    $region7: #{tpu_custom_call.1} parent=1 // pred_check_branch
      %26 = sbr.rel (0) target = $region9
    $region8: #{tpu_custom_call.1} parent=1 // pred_region
      _
    $region9: #{tpu_custom_call.1} parent=1 // pred_fallthru
      _
    // Predicated region
    $region10: #{tpu_custom_call.1} parent=1 // pred_check
      _
    $region11: #{tpu_custom_call.1} parent=1 // pred_check_branch
      %28 = sbr.rel (0) target = $region13
    $region12: #{tpu_custom_call.1} parent=1 // pred_region
      _
    $region13: #{tpu_custom_call.1} parent=1 // pred_fallthru
      _
    // Predicated region
    $region14: #{tpu_custom_call.1} parent=1 // pred_check
      _
    $region15: #{tpu_custom_call.1} parent=1 // pred_check_branch
      %30 = sbr.rel (0) target = $region17
    $region16: #{tpu_custom_call.1} parent=1 // pred_region
      %s32 = ssub.s32 256, 256
      %33 = vsyncadd [#allocation6], %s32
      %s34 = sshll.u32 [#allocation5], 4
      %s35 = int_to_ptr.vmem [resolvable:$true] %s34
      %40 = dma.hbm_to_vmem [thread:$0]  %s3, 256, %s35, [#allocation6], 64, 64, 4
    $region17: #{tpu_custom_call.1} parent=1 // pred_fallthru
      _
    // Predicated region
    $region18: #{tpu_custom_call.1} parent=1 // pred_check
      _
    $region19: #{tpu_custom_call.1} parent=1 // pred_check_branch
      %42 = sbr.rel (0) target = $region21
    $region20: #{tpu_custom_call.1} parent=1 // pred_region
      _
    $region21: #{tpu_custom_call.1} parent=1 // pred_fallthru
      _
    // Predicated region
    $region22: #{tpu_custom_call.1} parent=1 // pred_check
      _
    $region23: #{tpu_custom_call.1} parent=1 // pred_check_branch
      %44 = sbr.rel (0) target = $region25
    $region24: #{tpu_custom_call.1} parent=1 // pred_region
      %45 = dma.done [#allocation3], 256
    $region25: #{tpu_custom_call.1} parent=1 // pred_fallthru
      _
    // Predicated region
    $region26: #{tpu_custom_call.1} parent=1 // pred_check
      _
    $region27: #{tpu_custom_call.1} parent=1 // pred_check_branch
      %47 = sbr.rel (0) target = $region29
    $region28: #{tpu_custom_call.1} parent=1 // pred_region
      %48 = dma.done [#allocation6], 256
    $region29: #{tpu_custom_call.1} parent=1 // pred_fallthru
      _
    %v50 = vld [vmem:[#allocation2] sm:$0xff]
    %v51 = vld [vmem:[#allocation2 + $0x8] sm:$0xff]
    %vm52 = vcmask 261120
    %v53 = vsel %vm52, %v50, 0.0
    %54 = vadd.xlane.f32.xlu0 %v53
    %v55 = vpop.xlane.xlu0 %54
    %v56 = vsel %vm52, %v51, 0.0
    %57 = vadd.xlane.f32.xlu0 %v56
    %v58 = vpop.xlane.xlu0 %57
    %v59 = vrcp.pop 32.0
    %v60 = vmul.f32 %v55, %v59
    %v61 = vmul.f32 %v58, %v59
    %v62 = vsub.f32 %v50, %v60
    %v63 = vsub.f32 %v51, %v61
    %v64 = vmul.f32 %v62, %v62
    %v65 = vmul.f32 %v63, %v63
    %v66 = vsel %vm52, %v64, 0.0
    %67 = vadd.xlane.f32.xlu0 %v66
    %v68 = vpop.xlane.xlu0 %67
    %v69 = vsel %vm52, %v65, 0.0
    %70 = vadd.xlane.f32.xlu0 %v69
    %v71 = vpop.xlane.xlu0 %70
    %v72 = vmul.f32 %v68, %v59
    %v73 = vmul.f32 %v71, %v59
    %v74 = vadd.f32 %v72, 1e-05
    %v75 = vadd.f32 %v73, 1e-05
    %v76 = vrsqrt.pop %v74
    %v77 = vrsqrt.pop %v75
    %v78 = vmul.f32 %v62, %v76
    %v79 = vmul.f32 %v63, %v77
    %v80 = vld [vmem:[%s1] sm:$0x1]
    %v82 = vlaneseq
    %v83 = vshrl.u32 %v82, 7
    %v84 = vsub.s32 0, %v83
    %v85 = vrot.slane %v80, %v84
    %v87 = vmul.f32 %v78, %v85
    %v88 = vmul.f32 %v79, %v85
    %v89 = vld [vmem:[%s2] sm:$0x1]
    %v91 = vlaneseq
    %v92 = vshrl.u32 %v91, 7
    %v93 = vsub.s32 0, %v92
    %v94 = vrot.slane %v89, %v93
    %v96 = vadd.f32 %v87, %v94
    %v97 = vadd.f32 %v88, %v94
    %v98 = vpack.c.bf16 %v97, %v96
    %v99 = vld [vmem:[#allocation5] sm:$0xf]
    %v100 = vld [vmem:[#allocation5 + $0x4] sm:$0xf]
    %v101 = vld [vmem:[#allocation5 + $0x8] sm:$0xf]
    %v102 = vld [vmem:[#allocation5 + $0xc] sm:$0xf]
    %v103 = vld [vmem:[%s4] sm:$0x1]
    %v105 = vlaneseq
    %v106 = vshrl.u32 %v105, 7
    %v107 = vsub.s32 0, %v106
    %v108 = vrot.slane %v103, %v107
    %v114 = vunpack.c.l.b16 %v99
    %v115 = vunpack.c.l.b16 %v100
    %v116 = vunpack.c.l.b16 %v101
    %v117 = vunpack.c.l.b16 %v102
    %v118 = vpack.c.b16 %v115, %v114
    %v119 = vpack.c.b16 %v117, %v116
    %v123 = vsel %vm52, %v98, 0
    %125 = vmatprep.subr.bf16.mxu0 0
    %126 = vmatpush1.bf16.msra.mxu0 0
    %127 = vmatprep.subr.bf16.mxu0 0
    %128 = vmatpush1.bf16.msra.mxu0 0
    %129 = vmatprep.subr.bf16.mxu0 0
    %130 = vmatpush1.bf16.msra.mxu0 0
    %131 = vmatprep.subr.bf16.mxu0 0
    %132 = vmatpush1.bf16.msra.mxu0 0
    %133 = vmatprep.subr.bf16.mxu0 0
    %134 = vmatpush1.bf16.msra.mxu0 0
    %135 = vmatprep.subr.bf16.mxu0 0
    %136 = vmatpush1.bf16.msra.mxu0 0
    %137 = vmatprep.subr.bf16.mxu0 0
    %138 = vmatpush1.bf16.msra.mxu0 %v119
    %139 = vmatprep.subr.bf16.mxu0 0
    %140 = vmatpush1.bf16.msra.mxu0 %v118
    %141 = vmatprep.subr.bf16.mxu0 0
    %142 = vmatpush2.bf16.msra.mxu0 0
    %143 = vmatprep.subr.bf16.mxu0 0
    %144 = vmatpush2.bf16.msra.mxu0 0
    %145 = vmatprep.subr.bf16.mxu0 0
    %146 = vmatpush2.bf16.msra.mxu0 0
    %147 = vmatprep.subr.bf16.mxu0 0
    %148 = vmatpush2.bf16.msra.mxu0 0
    %149 = vmatprep.subr.bf16.mxu0 0
    %150 = vmatpush2.bf16.msra.mxu0 0
    %151 = vmatprep.subr.bf16.mxu0 0
    %152 = vmatpush2.bf16.msra.mxu0 0
    %153 = vmatprep.subr.bf16.mxu0 0
    %154 = vmatpush2.bf16.msra.mxu0 0
    %155 = vmatprep.subr.bf16.mxu0 0
    %156 = vmatpush2.bf16.msra.mxu0 0
    %157 = vmatprep.mubr.bf16.mxu0 0
    %158 = vmatmul.mubr.bf16.gmra.mxu0 %v123
    %v159 = vpop.f32.mrf.mxu0
    %v160 = vadd.f32 %v108, %v159
    %v161 = vpop.f32.mrf.mxu0
    %v162 = vpop.f32.mrf.mxu0
    %v163 = vadd.f32 %v108, %v162
    %v164 = vpop.f32.mrf.mxu0
    %165 = vdwg.mxu0
    %166 = vst.msk [vmem:[#allocation7] sm:$0xff] %vm52, %v160
    %167 = vst.msk [vmem:[#allocation7 + $0x8] sm:$0xff] %vm52, %v163
    // Predicated region
    $region30: #{tpu_custom_call.1} parent=1 // pred_check
      _
    $region31: #{tpu_custom_call.1} parent=1 // pred_check_branch
      %169 = sbr.rel (0) target = $region33
    $region32: #{tpu_custom_call.1} parent=1 // pred_region
      %s171 = ssub.s32 256, 256
      %172 = vsyncadd [#allocation4], %s171
      %s173 = sshll.u32 [#allocation7], 4
      %s174 = int_to_ptr.vmem [resolvable:$true] %s173
      %179 = dma.vmem_to_hbm [thread:$0]  %s174, 256, %s5, [#allocation4], 128, 128, 8
    $region33: #{tpu_custom_call.1} parent=1 // pred_fallthru
      _
    // Predicated region
    $region34: #{tpu_custom_call.1} parent=1 // pred_check
      _
    $region35: #{tpu_custom_call.1} parent=1 // pred_check_branch
      %181 = sbr.rel (0) target = $region37
    $region36: #{tpu_custom_call.1} parent=1 // pred_region
      %182 = dma.done [#allocation4], 256
    $region37: #{tpu_custom_call.1} parent=1 // pred_fallthru
      _
    %183 = vsyncpa [#allocation3], 1
    %184 = vsyncpa [#allocation6], 1
    %185 = vsyncpa [#allocation4], 1

</llo_original>
